<compile_context>
chip_gen: v5e
topology: v5e:2x2
jax: 0.10.0
libtpu: 0.0.40
codegen_flags: <defaults>
</compile_context>

<pallas_src>
import functools

import jax
import jax.numpy as jnp
from jax.experimental import pallas as pl
from jax.experimental.pallas import tpu as pltpu


def _round_up(x, m):
    return ((x + m - 1) // m) * m


# ------------------------------------------------------------------ stage 1 --
def _hs_kernel(h_ref, w_ref, dis_ref, hs_ref):
    """Hs = D^{-1/2} * (H @ W^T) for one row tile (lane-dense 128-wide output)."""
    hw = jnp.dot(h_ref[...], w_ref[...], preferred_element_type=jnp.float32)
    hs_ref[...] = (dis_ref[...] * hw).astype(hs_ref.dtype)


# ------------------------------------------------------------------ stage 2 --
def _gcn_agg_kernel(adj_ref, hs_ref, dis_ref, b_ref, out_ref, acc_ref,
                    *, row_tile, k_tile):
    """out[i] = tanh( dis_i * ( sum_k A[i,k] @ Hs[k] + Hs[i] ) + b ).

    adj_ref : (row_tile, k_tile)  bf16 tile of the (0/1) adjacency (streamed).
    hs_ref  : (n_p, nout_p)       f32, fully VMEM-resident (constant index_map).
    """
    i = pl.program_id(0)
    k = pl.program_id(1)

    @pl.when(k == 0)
    def _():
        acc_ref[...] = jnp.zeros_like(acc_ref)

    k0 = pl.multiple_of(k * k_tile, k_tile)
    hs_k = hs_ref[pl.ds(k0, k_tile), :]
    # adj is bf16 (exact for 0/1); accumulate in f32.
    acc_ref[...] += jnp.dot(adj_ref[...].astype(jnp.float32), hs_k,
                            preferred_element_type=jnp.float32)

    @pl.when(k == pl.num_programs(1) - 1)
    def _():
        # '+ Hs[i]' is the folded self-loop (+I); dis_ref scales rows (D^{-1/2}).
        r0 = pl.multiple_of(i * row_tile, row_tile)
        hs_i = hs_ref[pl.ds(r0, row_tile), :]
        res = dis_ref[...] * (acc_ref[...] + hs_i) + b_ref[...]
        out_ref[...] = jnp.tanh(res).astype(out_ref.dtype)


# ------------------------------------------------------------------ wrapper --
def gcn_layer(H, adj, W, b, *, row_tile=256, k_tile=2048):
    """GCNLayer forward. H: (N, nin), adj: (N, N), W: (nout, nin), b: (nout,)."""
    N, nin = H.shape
    nout = W.shape[0]
    f32 = jnp.float32

    nout_p = _round_up(nout, 128)          # lane-dense output width (do not over-pad)

    # --- tile sizing: row_tile | k_tile-candidate | n_p, with a large K tile. ---
    row_tile = min(row_tile, _round_up(N, 128))
    n_p = _round_up(N, row_tile)
    n_row = n_p // row_tile
    k_tile_max = max(k_tile, row_tile)
    # largest multiple of row_tile that divides n_p and is <= k_tile_max
    k_blocks = max(d for d in range(1, n_row + 1)
                   if n_row % d == 0 and d * row_tile <= k_tile_max)
    k_tile = k_blocks * row_tile
    n_k = n_p // k_tile
    pad_n = n_p - N

    # adj: one pad+cast pass to bf16 (0/1 -> exact); streamed once by stage 2.
    adj_b = adj.astype(jnp.bfloat16)
    if pad_n:
        adj_b = jnp.pad(adj_b, ((0, pad_n), (0, pad_n)))

    h_p = H.astype(f32)
    if pad_n:
        h_p = jnp.pad(h_p, ((0, pad_n), (0, 0)))

    w_t = W.astype(f32).T                                    # (nin, nout)
    b_p = b.astype(f32).reshape(1, nout)
    if nout_p != nout:
        w_t = jnp.pad(w_t, ((0, 0), (0, nout_p - nout)))
        b_p = jnp.pad(b_p, ((0, 0), (0, nout_p - nout)))

    # D^{-1/2} from column degrees of (A + I), computed on the ORIGINAL adj
    # (only the (N,) vector is padded; deg >= 1 so the reference's isinf guard
    # is provably dead).
    deg = jnp.sum(adj.astype(f32), axis=0) + 1.0
    dis = jax.lax.rsqrt(deg)
    if pad_n:
        dis = jnp.pad(dis, (0, pad_n), constant_values=1.0)
    dis = dis.reshape(n_p, 1)

    # ---------------- Stage 1: Hs = D^{-1/2} * (H @ W^T)  -> (n_p, nout_p) ----
    hs = pl.pallas_call(
        _hs_kernel,
        out_shape=jax.ShapeDtypeStruct((n_p, nout_p), f32),
        grid_spec=pltpu.PrefetchScalarGridSpec(
            num_scalar_prefetch=0,
            grid=(n_row,),
            in_specs=[
                pl.BlockSpec((row_tile, nin), lambda i: (i, 0)),     # H rows
                pl.BlockSpec((nin, nout_p), lambda i: (0, 0)),       # W^T (resident)
                pl.BlockSpec((row_tile, 1), lambda i: (i, 0)),       # dis rows
            ],
            out_specs=pl.BlockSpec((row_tile, nout_p), lambda i: (i, 0)),
        ),
        compiler_params=pltpu.CompilerParams(
            dimension_semantics=("parallel",)),
    )(h_p, w_t, dis)

    # ---------------- Stage 2: row-tiled aggregation, K-reduction over cols ---
    kernel = functools.partial(_gcn_agg_kernel, row_tile=row_tile, k_tile=k_tile)

    vmem_est = (n_p * nout_p * 4                 # resident Hs (single buffer)
                + 2 * row_tile * k_tile * 2      # adj double-buffer (bf16)
                + 2 * row_tile * nout_p * 4      # out double-buffer
                + row_tile * nout_p * 4          # f32 accumulator scratch
                + 4 * (row_tile + nout_p) * 4)   # dis / bias buffers
    vmem_limit = int(min(max(2 * vmem_est, 32 << 20), 64 << 20))

    out_p = pl.pallas_call(
        kernel,
        out_shape=jax.ShapeDtypeStruct((n_p, nout_p), f32),
        grid_spec=pltpu.PrefetchScalarGridSpec(
            num_scalar_prefetch=0,
            grid=(n_row, n_k),
            in_specs=[
                pl.BlockSpec((row_tile, k_tile), lambda i, k: (i, k)),   # adj tile (bf16)
                pl.BlockSpec((n_p, nout_p), lambda i, k: (0, 0)),        # Hs (resident)
                pl.BlockSpec((row_tile, 1), lambda i, k: (i, 0)),        # dis rows
                pl.BlockSpec((1, nout_p), lambda i, k: (0, 0)),          # bias
            ],
            out_specs=pl.BlockSpec((row_tile, nout_p), lambda i, k: (i, 0)),
            scratch_shapes=[pltpu.VMEM((row_tile, nout_p), f32)],
        ),
        compiler_params=pltpu.CompilerParams(
            dimension_semantics=("parallel", "arbitrary"),
            vmem_limit_bytes=vmem_limit),
    )(adj_b, hs, dis, b_p)

    return out_p[:N, :nout]


# ---------------------------------------------------------------- reference --
def gcn_reference(H, adj, W, b):
    N = adj.shape[0]
    A = adj + jnp.eye(N, dtype=adj.dtype)
    deg = jnp.sum(A, axis=0)
    dis = jnp.power(deg, -0.5)
    dis = jnp.where(jnp.isinf(dis), 0.0, dis)
    adj_n = (jnp.diag(dis) @ A) @ jnp.diag(dis)
    return jnp.tanh(adj_n @ H @ W.T + b)


if __name__ == "__main__":
    N, NIN, NOUT = 16, 32, 8

    key = jax.random.PRNGKey(0)
    k_adj, k_h, k_w, k_b = jax.random.split(key, 4)

    # random 0/1 adjacency
    adj = (jax.random.uniform(k_adj, (N, N)) > 0.7).astype(jnp.float32)
    H = jax.random.normal(k_h, (N, NIN), dtype=jnp.float32)

    # nn.Linear(nin, nout): W (nout, nin), b (nout,), init U(-1/sqrt(nin), 1/sqrt(nin))
    bound = 1.0 / (NIN ** 0.5)
    W = jax.random.uniform(k_w, (NOUT, NIN), minval=-bound, maxval=bound, dtype=jnp.float32)
    b = jax.random.uniform(k_b, (NOUT,), minval=-bound, maxval=bound, dtype=jnp.float32)

    out = gcn_layer(H, adj, W, b)
    out = jax.block_until_ready(out)

    ref = gcn_reference(H, adj, W, b)
    assert out.shape == (N, NOUT)
    assert jnp.allclose(out, ref, atol=3e-5, rtol=1e-5), "mismatch vs reference"

    print("KERNEL_OK")
</pallas_src>

<mosaic_0001>
module attributes {stable_mosaic.version = 11 : i64} {
  func.func @_hs_kernel(%arg0: i32, %arg1: memref<128x32xf32, #tpu.memory_space<vmem>>, %arg2: memref<32x128xf32, #tpu.memory_space<vmem>>, %arg3: memref<128x1xf32, #tpu.memory_space<vmem>>, %arg4: memref<128x128xf32, #tpu.memory_space<vmem>>) attributes {dimension_semantics = [#tpu.dimension_semantics<parallel>], iteration_bounds = array<i64: 1>, scalar_prefetch = 0 : i64, scratch_operands = 0 : i64, tpu.core_type = #tpu.core_type<tc>, window_params = [{transform_indices = @transform_0, window_bounds = array<i64: 128, 32>}, {pipeline_mode = #tpu.pipeline_mode<synchronous>, transform_indices = @transform_1, window_bounds = array<i64: 32, 128>}, {transform_indices = @transform_2, window_bounds = array<i64: 128, 1>}, {transform_indices = @transform_3, window_bounds = array<i64: 128, 128>}]} {
    %c0 = arith.constant 0 : index
    %c0_0 = arith.constant 0 : index
    %0 = vector.load %arg1[%c0, %c0_0] : memref<128x32xf32, #tpu.memory_space<vmem>>, vector<128x32xf32>
    %c0_1 = arith.constant 0 : index
    %c0_2 = arith.constant 0 : index
    %1 = vector.load %arg2[%c0_1, %c0_2] : memref<32x128xf32, #tpu.memory_space<vmem>>, vector<32x128xf32>
    %cst = arith.constant dense<0.000000e+00> : vector<128x128xf32>
    %2 = tpu.matmul %0, %1, %cst {dimension_numbers = #tpu.dot_dimension_numbers<[1], [0], [0], [1], [0, 0, 1, 1], [], []>} : vector<128x32xf32>, vector<32x128xf32>, vector<128x128xf32> -> vector<128x128xf32>
    %c0_3 = arith.constant 0 : index
    %c0_4 = arith.constant 0 : index
    %3 = vector.load %arg3[%c0_3, %c0_4] : memref<128x1xf32, #tpu.memory_space<vmem>>, vector<128x1xf32>
    %4 = vector.broadcast %3 : vector<128x1xf32> to vector<128x128xf32>
    %5 = arith.mulf %4, %2 : vector<128x128xf32>
    %c0_5 = arith.constant 0 : index
    %c0_6 = arith.constant 0 : index
    %6 = vector.load %arg4[%c0_5, %c0_6] : memref<128x128xf32, #tpu.memory_space<vmem>>, vector<128x128xf32>
    tpu.vector_store %arg4[%c0_5, %c0_6], %5 {strides = array<i32>} : memref<128x128xf32, #tpu.memory_space<vmem>>, vector<128x128xf32>,
    return
  }
  func.func @transform_0(%arg0: i32) -> (i32, i32) {
    %c0_i32 = arith.constant 0 : i32
    %c0_i32_0 = arith.constant 0 : i32
    return %arg0, %c0_i32 : i32, i32
  }
  func.func @transform_1(%arg0: i32) -> (i32, i32) {
    %c0_i32 = arith.constant 0 : i32
    %c0_i32_0 = arith.constant 0 : i32
    %c0_i32_1 = arith.constant 0 : i32
    return %c0_i32, %c0_i32_0 : i32, i32
  }
  func.func @transform_2(%arg0: i32) -> (i32, i32) {
    %c0_i32 = arith.constant 0 : i32
    %c0_i32_0 = arith.constant 0 : i32
    return %arg0, %c0_i32 : i32, i32
  }
  func.func @transform_3(%arg0: i32) -> (i32, i32) {
    %c0_i32 = arith.constant 0 : i32
    %c0_i32_0 = arith.constant 0 : i32
    return %arg0, %c0_i32 : i32, i32
  }
}

</mosaic_0001>

<llo_original>
// kernel: tpu_custom_call.1
$region0: #{tpu_custom_call.1}
  #allocation0 [shape = 'u32[]', space=smem, size = 0x4, offset = 0x4, fixed_abs, tag = 'smem constant byte address 0x4 - core index']
  #allocation1 [shape = 'u32[72,128]{1,0:T(1,128)}', space=vmem, size = 0x9000, scoped, tag = 'internal scratch']
  %s0 = inlined_call_operand.vmem [shape: f32[128,32], index: 0, kind: input, shape index: {}]
  %s1 = inlined_call_operand.vmem [shape: f32[32,128], index: 1, kind: input, shape index: {}]
  %s2 = inlined_call_operand.vmem [shape: f32[128,1], index: 2, kind: input, shape index: {}]
  %s3 = inlined_call_operand.hbm [shape: f32[128,128], index: 3, kind: output, shape index: {}]
  %s4 = sld [smem:[#allocation0]]
  $region22: #{tpu_custom_call.1} parent=0
    _
  %s6 = ssub.s32 1, %s4
  %s7 = scalar_select 0, %s6, %s4
  $region1: #{tpu_custom_call.1} parent=0
    #allocation2 [shape = 'u8[65536]{0}', space=vmem, size = 0x10000, scoped, tag = 'output window, operand 0, single buffered']
    #allocation3 [shape = 's32[1]{0}', space=sflag, size = 0x4, scoped, tag = 'scoped memory for tpu_custom_call.1']
    %8 = vsyncpa [#allocation3], 0
    // Predicated region
    $region2: #{tpu_custom_call.1} parent=1 // pred_check
      _
    $region3: #{tpu_custom_call.1} parent=1 // pred_check_branch
      %10 = sbr.rel (0) target = $region5
    $region4: #{tpu_custom_call.1} parent=1 // pred_region
      _
    $region5: #{tpu_custom_call.1} parent=1 // pred_fallthru
      _
    // Predicated region
    $region6: #{tpu_custom_call.1} parent=1 // pred_check
      _
    $region7: #{tpu_custom_call.1} parent=1 // pred_check_branch
      %12 = sbr.rel (0) target = $region9
    $region8: #{tpu_custom_call.1} parent=1 // pred_region
      _
    $region9: #{tpu_custom_call.1} parent=1 // pred_fallthru
      _
    // Predicated region
    $region10: #{tpu_custom_call.1} parent=1 // pred_check
      _
    $region11: #{tpu_custom_call.1} parent=1 // pred_check_branch
      %14 = sbr.rel (0) target = $region13
    $region12: #{tpu_custom_call.1} parent=1 // pred_region
      _
    $region13: #{tpu_custom_call.1} parent=1 // pred_fallthru
      _
    %v15 = vld [vmem:[%s0] sm:$0xff]
    %v16 = vld [vmem:[%s0 + $0x8] sm:$0xff]
    %v17 = vld [vmem:[%s0 + $0x10] sm:$0xff]
    %v18 = vld [vmem:[%s0 + $0x18] sm:$0xff]
    %v19 = vld [vmem:[%s0 + $0x20] sm:$0xff]
    %v20 = vld [vmem:[%s0 + $0x28] sm:$0xff]
    %v21 = vld [vmem:[%s0 + $0x30] sm:$0xff]
    %v22 = vld [vmem:[%s0 + $0x38] sm:$0xff]
    %v23 = vld [vmem:[%s0 + $0x40] sm:$0xff]
    %v24 = vld [vmem:[%s0 + $0x48] sm:$0xff]
    %v25 = vld [vmem:[%s0 + $0x50] sm:$0xff]
    %v26 = vld [vmem:[%s0 + $0x58] sm:$0xff]
    %v27 = vld [vmem:[%s0 + $0x60] sm:$0xff]
    %v28 = vld [vmem:[%s0 + $0x68] sm:$0xff]
    %v29 = vld [vmem:[%s0 + $0x70] sm:$0xff]
    %v30 = vld [vmem:[%s0 + $0x78] sm:$0xff]
    %v31 = vld [vmem:[%s1] sm:$0xff]
    %v32 = vld [vmem:[%s1 + $0x8] sm:$0xff]
    %v33 = vld [vmem:[%s1 + $0x10] sm:$0xff]
    %v34 = vld [vmem:[%s1 + $0x18] sm:$0xff]
    %vm35 = vcmask 261120
    %v37 = vsel %vm35, %v15, 0
    %v40 = vsel %vm35, %v16, 0
    %v43 = vsel %vm35, %v17, 0
    %v46 = vsel %vm35, %v18, 0
    %v49 = vsel %vm35, %v19, 0
    %v52 = vsel %vm35, %v20, 0
    %v55 = vsel %vm35, %v21, 0
    %v58 = vsel %vm35, %v22, 0
    %v61 = vsel %vm35, %v23, 0
    %v64 = vsel %vm35, %v24, 0
    %v67 = vsel %vm35, %v25, 0
    %v70 = vsel %vm35, %v26, 0
    %v73 = vsel %vm35, %v27, 0
    %v76 = vsel %vm35, %v28, 0
    %v79 = vsel %vm35, %v29, 0
    %v82 = vsel %vm35, %v30, 0
    %84 = vmatpush.msra.mxu0 0.0
    %85 = vmatpush.msra.mxu0 0.0
    %86 = vmatpush.msra.mxu0 0.0
    %87 = vmatpush.msra.mxu0 0.0
    %88 = vmatpush.msra.mxu0 0.0
    %89 = vmatpush.msra.mxu0 0.0
    %90 = vmatpush.msra.mxu0 0.0
    %91 = vmatpush.msra.mxu0 0.0
    %92 = vmatpush.msra.mxu0 0.0
    %93 = vmatpush.msra.mxu0 0.0
    %94 = vmatpush.msra.mxu0 0.0
    %95 = vmatpush.msra.mxu0 0.0
    %96 = vmatpush.msra.mxu0 %v34
    %97 = vmatpush.msra.mxu0 %v33
    %98 = vmatpush.msra.mxu0 %v32
    %99 = vmatpush.msra.mxu0 %v31
    %100 = vmatmul.f32.gmra.mxu0 %v37
    %v101 = vpop.f32.mrf.mxu0
    %v102 = vadd.f32 0.0, %v101
    %103 = vmatmul.f32.gmra.mxu0 %v40
    %v104 = vpop.f32.mrf.mxu0
    %v105 = vadd.f32 0.0, %v104
    %106 = vmatmul.f32.gmra.mxu0 %v43
    %v107 = vpop.f32.mrf.mxu0
    %v108 = vadd.f32 0.0, %v107
    %109 = vmatmul.f32.gmra.mxu0 %v46
    %v110 = vpop.f32.mrf.mxu0
    %v111 = vadd.f32 0.0, %v110
    %112 = vmatmul.f32.gmra.mxu0 %v49
    %v113 = vpop.f32.mrf.mxu0
    %v114 = vadd.f32 0.0, %v113
    %115 = vmatmul.f32.gmra.mxu0 %v52
    %v116 = vpop.f32.mrf.mxu0
    %v117 = vadd.f32 0.0, %v116
    %118 = vmatmul.f32.gmra.mxu0 %v55
    %v119 = vpop.f32.mrf.mxu0
    %v120 = vadd.f32 0.0, %v119
    %121 = vmatmul.f32.gmra.mxu0 %v58
    %v122 = vpop.f32.mrf.mxu0
    %v123 = vadd.f32 0.0, %v122
    %124 = vmatmul.f32.gmra.mxu0 %v61
    %v125 = vpop.f32.mrf.mxu0
    %v126 = vadd.f32 0.0, %v125
    %127 = vmatmul.f32.gmra.mxu0 %v64
    %v128 = vpop.f32.mrf.mxu0
    %v129 = vadd.f32 0.0, %v128
    %130 = vmatmul.f32.gmra.mxu0 %v67
    %v131 = vpop.f32.mrf.mxu0
    %v132 = vadd.f32 0.0, %v131
    %133 = vmatmul.f32.gmra.mxu0 %v70
    %v134 = vpop.f32.mrf.mxu0
    %v135 = vadd.f32 0.0, %v134
    %136 = vmatmul.f32.gmra.mxu0 %v73
    %v137 = vpop.f32.mrf.mxu0
    %v138 = vadd.f32 0.0, %v137
    %139 = vmatmul.f32.gmra.mxu0 %v76
    %v140 = vpop.f32.mrf.mxu0
    %v141 = vadd.f32 0.0, %v140
    %142 = vmatmul.f32.gmra.mxu0 %v79
    %v143 = vpop.f32.mrf.mxu0
    %v144 = vadd.f32 0.0, %v143
    %145 = vmatmul.f32.gmra.mxu0 %v82
    %v146 = vpop.f32.mrf.mxu0
    %v147 = vadd.f32 0.0, %v146
    %148 = vdwg.mxu0
    %v149 = vld [vmem:[%s2] sm:$0xff]
    %v150 = vld [vmem:[%s2 + $0x8] sm:$0xff]
    %v151 = vld [vmem:[%s2 + $0x10] sm:$0xff]
    %v152 = vld [vmem:[%s2 + $0x18] sm:$0xff]
    %v153 = vld [vmem:[%s2 + $0x20] sm:$0xff]
    %v154 = vld [vmem:[%s2 + $0x28] sm:$0xff]
    %v155 = vld [vmem:[%s2 + $0x30] sm:$0xff]
    %v156 = vld [vmem:[%s2 + $0x38] sm:$0xff]
    %v157 = vld [vmem:[%s2 + $0x40] sm:$0xff]
    %v158 = vld [vmem:[%s2 + $0x48] sm:$0xff]
    %v159 = vld [vmem:[%s2 + $0x50] sm:$0xff]
    %v160 = vld [vmem:[%s2 + $0x58] sm:$0xff]
    %v161 = vld [vmem:[%s2 + $0x60] sm:$0xff]
    %v162 = vld [vmem:[%s2 + $0x68] sm:$0xff]
    %v163 = vld [vmem:[%s2 + $0x70] sm:$0xff]
    %v164 = vld [vmem:[%s2 + $0x78] sm:$0xff]
    %166 = vset.pattern.permute.xlu0 0
    %167 = vperm.xlu0 %166, %v149
    %v168 = vpop.permute.xlu0 %167
    %171 = vset.pattern.permute.xlu0 0
    %172 = vperm.xlu0 %171, %v150
    %v173 = vpop.permute.xlu0 %172
    %176 = vset.pattern.permute.xlu0 0
    %177 = vperm.xlu0 %176, %v151
    %v178 = vpop.permute.xlu0 %177
    %181 = vset.pattern.permute.xlu0 0
    %182 = vperm.xlu0 %181, %v152
    %v183 = vpop.permute.xlu0 %182
    %186 = vset.pattern.permute.xlu0 0
    %187 = vperm.xlu0 %186, %v153
    %v188 = vpop.permute.xlu0 %187
    %191 = vset.pattern.permute.xlu0 0
    %192 = vperm.xlu0 %191, %v154
    %v193 = vpop.permute.xlu0 %192
    %196 = vset.pattern.permute.xlu0 0
    %197 = vperm.xlu0 %196, %v155
    %v198 = vpop.permute.xlu0 %197
    %201 = vset.pattern.permute.xlu0 0
    %202 = vperm.xlu0 %201, %v156
    %v203 = vpop.permute.xlu0 %202
    %206 = vset.pattern.permute.xlu0 0
    %207 = vperm.xlu0 %206, %v157
    %v208 = vpop.permute.xlu0 %207
    %211 = vset.pattern.permute.xlu0 0
    %212 = vperm.xlu0 %211, %v158
    %v213 = vpop.permute.xlu0 %212
    %216 = vset.pattern.permute.xlu0 0
    %217 = vperm.xlu0 %216, %v159
    %v218 = vpop.permute.xlu0 %217
    %221 = vset.pattern.permute.xlu0 0
    %222 = vperm.xlu0 %221, %v160
    %v223 = vpop.permute.xlu0 %222
    %226 = vset.pattern.permute.xlu0 0
    %227 = vperm.xlu0 %226, %v161
    %v228 = vpop.permute.xlu0 %227
    %231 = vset.pattern.permute.xlu0 0
    %232 = vperm.xlu0 %231, %v162
    %v233 = vpop.permute.xlu0 %232
    %236 = vset.pattern.permute.xlu0 0
    %237 = vperm.xlu0 %236, %v163
    %v238 = vpop.permute.xlu0 %237
    %241 = vset.pattern.permute.xlu0 0
    %242 = vperm.xlu0 %241, %v164
    %v243 = vpop.permute.xlu0 %242
    %v245 = vmul.f32 %v168, %v102
    %v246 = vmul.f32 %v173, %v105
    %v247 = vmul.f32 %v178, %v108
    %v248 = vmul.f32 %v183, %v111
    %v249 = vmul.f32 %v188, %v114
    %v250 = vmul.f32 %v193, %v117
    %v251 = vmul.f32 %v198, %v120
    %v252 = vmul.f32 %v203, %v123
    %v253 = vmul.f32 %v208, %v126
    %v254 = vmul.f32 %v213, %v129
    %v255 = vmul.f32 %v218, %v132
    %v256 = vmul.f32 %v223, %v135
    %v257 = vmul.f32 %v228, %v138
    %v258 = vmul.f32 %v233, %v141
    %v259 = vmul.f32 %v238, %v144
    %v260 = vmul.f32 %v243, %v147
    %261 = vst [vmem:[#allocation2] sm:$0xff] %v245
    %262 = vst [vmem:[#allocation2 + $0x8] sm:$0xff] %v246
    %263 = vst [vmem:[#allocation2 + $0x10] sm:$0xff] %v247
    %264 = vst [vmem:[#allocation2 + $0x18] sm:$0xff] %v248
    %265 = vst [vmem:[#allocation2 + $0x20] sm:$0xff] %v249
    %266 = vst [vmem:[#allocation2 + $0x28] sm:$0xff] %v250
    %267 = vst [vmem:[#allocation2 + $0x30] sm:$0xff] %v251
    %268 = vst [vmem:[#allocation2 + $0x38] sm:$0xff] %v252
    %269 = vst [vmem:[#allocation2 + $0x40] sm:$0xff] %v253
    %270 = vst [vmem:[#allocation2 + $0x48] sm:$0xff] %v254
    %271 = vst [vmem:[#allocation2 + $0x50] sm:$0xff] %v255
    %272 = vst [vmem:[#allocation2 + $0x58] sm:$0xff] %v256
    %273 = vst [vmem:[#allocation2 + $0x60] sm:$0xff] %v257
    %274 = vst [vmem:[#allocation2 + $0x68] sm:$0xff] %v258
    %275 = vst [vmem:[#allocation2 + $0x70] sm:$0xff] %v259
    %276 = vst [vmem:[#allocation2 + $0x78] sm:$0xff] %v260
    // Predicated region
    $region14: #{tpu_custom_call.1} parent=1 // pred_check
      _
    $region15: #{tpu_custom_call.1} parent=1 // pred_check_branch
      %278 = sbr.rel (0) target = $region17
    $region16: #{tpu_custom_call.1} parent=1 // pred_region
      %280 = vsyncadd [#allocation3], 0
      %s281 = sshll.u32 [#allocation2], 4
      %s282 = int_to_ptr.vmem [resolvable:$true] %s281
      %s283 = sshll.u32 %s3, 4
      %s284 = int_to_ptr.hbm [resolvable:$true] %s283
      %289 = dma.vmem_to_hbm [thread:$0]  %s282, 2048, %s284, [#allocation3], 128, 128, 8
    $region17: #{tpu_custom_call.1} parent=1 // pred_fallthru
      _
    // Predicated region
    $region18: #{tpu_custom_call.1} parent=1 // pred_check
      _
    $region19: #{tpu_custom_call.1} parent=1 // pred_check_branch
      %291 = sbr.rel (0) target = $region21
    $region20: #{tpu_custom_call.1} parent=1 // pred_region
      %293 = dma.done [#allocation3], 2048
    $region21: #{tpu_custom_call.1} parent=1 // pred_fallthru
      _
    %294 = vsyncpa [#allocation3], 1

</llo_original>
